<compile_context>
chip_gen: v7x
topology: tpu7x:2x2x1
jax: 0.10.0
libtpu: 0.0.40
codegen_flags: <defaults>
</compile_context>

<pallas_src>
import jax
import jax.numpy as jnp
import numpy as np
from jax.experimental import pallas as pl
from jax.experimental.pallas import tpu as pltpu


def reorganize_ref(x):
    """Pure-JAX reference reproducing the PyTorch forward exactly."""
    B, C, H, W = x.shape
    t = x.reshape(B, C // 4, H, 2, W, 2)
    t = jnp.transpose(t, (0, 3, 5, 1, 2, 4))
    return t.reshape(B, 4 * C, H // 2, W // 2)


def _reorg_kernel(x_ref, sel_ref, o_ref):
    # x_ref:   (1, TG, K)     folded input tile, K = 4 * r * W
    # sel_ref: (K, K)         constant 0/1 column-permutation matrix (grid-invariant)
    # o_ref:   (1, 4, TG, S)  folded output tile, S = r * W (K = 4 * S)
    S = o_ref.shape[-1]
    rows = x_ref[0]                                        # (TG, K) full-block, lane-dense load
    res = jnp.dot(rows, sel_ref[...],
                  preferred_element_type=jnp.float32)      # (TG, K): cols = [s=0 | s=1 | s=2 | s=3]
    res = res.astype(o_ref.dtype)
    for s in range(4):                                     # slab slices are vreg-aligned when S % 128 == 0
        o_ref[0, s, :, :] = res[:, s * S:(s + 1) * S]      # dense (TG, S) stores, no masked narrow vst


def _choose_fold(M, W, max_slab=256):
    """Fold factor r (divisor of M): pack r rows of the (M, 4W) view into one lane-row."""
    divs = [r for r in range(1, M + 1) if M % r == 0 and r * W <= max_slab]
    if not divs:
        return 1
    for r in divs:                      # prefer 128-aligned, fully dense output slabs
        if (r * W) % 128 == 0:
            return r
    for r in divs:                      # else: dense-ish slabs with the smallest MXU cost
        if r * W >= 96:
            return r
    return divs[-1]


def _choose_block_rows(G, K, itemsize, target_bytes=4 << 20):
    """Rows per tile: ~4 MiB blocks, multiple of 8, and >= 2 tiles when G allows (dual-TC v7x)."""
    if G <= 8:
        return int(G)
    tg = target_bytes // max(1, K * itemsize)
    if G >= 16:
        tg = min(tg, (G + 1) // 2)      # guarantee >= 2 row-tiles so both v7x TensorCores get work
    tg = max(8, min(tg, G))
    return int((tg // 8) * 8)


def reorganize(x):
    """Pallas implementation of Reorganize.forward (stride = 2, as in the module)."""
    B, C, H, W = x.shape
    assert C % 4 == 0 and H % 2 == 0 and W % 2 == 0

    if not jnp.issubdtype(x.dtype, jnp.floating):
        # TODO(synk): integer inputs need a non-MXU de-interleave kernel (v7x MXU has no int
        # mode, f32 accumulation only exact below 2^24); use the exact XLA path for them.
        return reorganize_ref(x)

    M = (C // 4) * H
    r = _choose_fold(M, W)
    G = M // r
    S = r * W                 # output slab width (lanes)
    K = 4 * S                 # folded input row width (lanes)
    itemsize = x.dtype.itemsize

    # Free flat reshape: per batch (G, K); lane-row g packs rows m = g*r + j (j < r) of the
    # (M, 4W) view; within a row, source col = j*4W + s1*2W + 2w + s2.
    xin = x.reshape(B, G, K)

    # (K, K) 0/1 selection matrix: destination col dst = s*S + j*W + w (s = 2*s1 + s2) picks
    # source col src = j*4W + s1*2W + 2w + s2.
    dst = np.arange(K)
    s_idx = dst // S
    j_idx = (dst % S) // W
    w_idx = dst % W
    src = j_idx * (4 * W) + (s_idx // 2) * (2 * W) + 2 * w_idx + (s_idx % 2)
    sel = jnp.asarray((np.arange(K)[:, None] == src[None, :]).astype(x.dtype))

    tg = _choose_block_rows(G, K, itemsize)
    grid = (B, pl.cdiv(G, tg))

    # 2x input buffers + 2x output buffers (same size) + 2x sel + margin; kept v7x-safe.
    block_bytes = tg * K * itemsize
    vmem_need = 4 * block_bytes + 2 * K * K * itemsize + (4 << 20)
    vmem_limit = int(max(32 << 20, min(vmem_need, 56 << 20)))

    out = pl.pallas_call(
        _reorg_kernel,
        out_shape=jax.ShapeDtypeStruct((B, 4, G, S), x.dtype),
        grid_spec=pltpu.PrefetchScalarGridSpec(
            num_scalar_prefetch=0,
            grid=grid,
            in_specs=[
                pl.BlockSpec((1, tg, K), lambda b, t: (b, t, 0)),
                pl.BlockSpec((K, K), lambda b, t: (0, 0)),   # grid-invariant constant, DMA'd once
            ],
            out_specs=pl.BlockSpec((1, 4, tg, S), lambda b, t: (b, 0, t, 0)),
        ),
        compiler_params=pltpu.CompilerParams(
            dimension_semantics=("parallel", "parallel"),
            vmem_limit_bytes=vmem_limit,
        ),
        cost_estimate=pl.CostEstimate(
            flops=0,
            transcendentals=0,
            bytes_accessed=2 * x.size * itemsize,
        ),
    )(xin, sel)

    # Final .view of the PyTorch module: a free ravel of the contiguous (s, m, w) result.
    return out.reshape(B, 4 * C, H // 2, W // 2)


if __name__ == "__main__":
    key = jax.random.PRNGKey(0)

    # Primary case: B=2, C=8, H=W=16 (folds to 128-wide, vreg-aligned output slabs).
    B, C, H, W = 2, 8, 16, 16
    x = jax.random.normal(key, (B, C, H, W), dtype=jnp.float32)
    out = jax.block_until_ready(reorganize(x))
    ref = jax.block_until_ready(reorganize_ref(x))
    assert out.shape == (B, 4 * C, H // 2, W // 2), out.shape
    np.testing.assert_allclose(np.asarray(out), np.asarray(ref), rtol=0, atol=1e-6)

    # Non-power-of-two width with a ragged row-tile tail (G = 13 -> tiles of 8 + 5).
    x2 = jax.random.normal(jax.random.PRNGKey(1), (1, 8, 26, 26), dtype=jnp.float32)
    np.testing.assert_allclose(np.asarray(reorganize(x2)),
                               np.asarray(reorganize_ref(x2)), rtol=0, atol=1e-6)

    # bf16 path (selection matmul stays exact: every output element is one x*1 product).
    x3 = jax.random.normal(jax.random.PRNGKey(2), (2, 8, 16, 16), dtype=jnp.bfloat16)
    np.testing.assert_allclose(np.asarray(reorganize(x3), dtype=np.float32),
                               np.asarray(reorganize_ref(x3), dtype=np.float32),
                               rtol=0, atol=1e-6)

    print("KERNEL_OK")
</pallas_src>

<mosaic_0001>
module attributes {stable_mosaic.version = 11 : i64} {
  func.func @_reorg_kernel(%arg0: i32, %arg1: i32, %arg2: memref<1x4x512xf32, #tpu.memory_space<vmem>>, %arg3: memref<512x512xf32, #tpu.memory_space<vmem>>, %arg4: memref<1x4x4x128xf32, #tpu.memory_space<vmem>>) attributes {dimension_semantics = [#tpu.dimension_semantics<parallel>, #tpu.dimension_semantics<parallel>], iteration_bounds = array<i64: 2, 1>, scalar_prefetch = 0 : i64, scratch_operands = 0 : i64, tpu.core_type = #tpu.core_type<tc>, window_params = [{transform_indices = @transform_0, window_bounds = array<i64: 1, 4, 512>}, {pipeline_mode = #tpu.pipeline_mode<synchronous>, transform_indices = @transform_1, window_bounds = array<i64: 512, 512>}, {transform_indices = @transform_2, window_bounds = array<i64: 1, 4, 4, 128>}]} {
    %c0 = arith.constant 0 : index
    %c0_0 = arith.constant 0 : index
    %c0_1 = arith.constant 0 : index
    %0 = vector.load %arg2[%c0, %c0_0, %c0_1] : memref<1x4x512xf32, #tpu.memory_space<vmem>>, vector<1x4x512xf32>
    %1 = vector.shape_cast %0 : vector<1x4x512xf32> to vector<4x512xf32>
    %c0_2 = arith.constant 0 : index
    %c0_3 = arith.constant 0 : index
    %2 = vector.load %arg3[%c0_2, %c0_3] : memref<512x512xf32, #tpu.memory_space<vmem>>, vector<512x512xf32>
    %cst = arith.constant dense<0.000000e+00> : vector<4x512xf32>
    %3 = tpu.matmul %1, %2, %cst {dimension_numbers = #tpu.dot_dimension_numbers<[1], [0], [0], [1], [0, 0, 1, 1], [], []>} : vector<4x512xf32>, vector<512x512xf32>, vector<4x512xf32> -> vector<4x512xf32>
    %4 = vector.extract_strided_slice %3 {offsets = [0, 0], sizes = [4, 128], strides = [1, 1]} : vector<4x512xf32> to vector<4x128xf32>
    %c0_4 = arith.constant 0 : index
    %c0_5 = arith.constant 0 : index
    %c0_6 = arith.constant 0 : index
    %c0_7 = arith.constant 0 : index
    %5 = vector.load %arg4[%c0_4, %c0_5, %c0_6, %c0_7] : memref<1x4x4x128xf32, #tpu.memory_space<vmem>>, vector<1x1x4x128xf32>
    %6 = vector.shape_cast %5 : vector<1x1x4x128xf32> to vector<4x128xf32>
    %7 = vector.shape_cast %4 : vector<4x128xf32> to vector<1x1x4x128xf32>
    tpu.vector_store %arg4[%c0_4, %c0_5, %c0_6, %c0_7], %7 {strides = array<i32>} : memref<1x4x4x128xf32, #tpu.memory_space<vmem>>, vector<1x1x4x128xf32>,
    %8 = vector.extract_strided_slice %3 {offsets = [0, 128], sizes = [4, 128], strides = [1, 1]} : vector<4x512xf32> to vector<4x128xf32>
    %c0_8 = arith.constant 0 : index
    %c1 = arith.constant 1 : index
    %c0_9 = arith.constant 0 : index
    %c0_10 = arith.constant 0 : index
    %9 = vector.load %arg4[%c0_8, %c1, %c0_9, %c0_10] : memref<1x4x4x128xf32, #tpu.memory_space<vmem>>, vector<1x1x4x128xf32>
    %10 = vector.shape_cast %9 : vector<1x1x4x128xf32> to vector<4x128xf32>
    %11 = vector.shape_cast %8 : vector<4x128xf32> to vector<1x1x4x128xf32>
    tpu.vector_store %arg4[%c0_8, %c1, %c0_9, %c0_10], %11 {strides = array<i32>} : memref<1x4x4x128xf32, #tpu.memory_space<vmem>>, vector<1x1x4x128xf32>,
    %12 = vector.extract_strided_slice %3 {offsets = [0, 256], sizes = [4, 128], strides = [1, 1]} : vector<4x512xf32> to vector<4x128xf32>
    %c0_11 = arith.constant 0 : index
    %c2 = arith.constant 2 : index
    %c0_12 = arith.constant 0 : index
    %c0_13 = arith.constant 0 : index
    %13 = vector.load %arg4[%c0_11, %c2, %c0_12, %c0_13] : memref<1x4x4x128xf32, #tpu.memory_space<vmem>>, vector<1x1x4x128xf32>
    %14 = vector.shape_cast %13 : vector<1x1x4x128xf32> to vector<4x128xf32>
    %15 = vector.shape_cast %12 : vector<4x128xf32> to vector<1x1x4x128xf32>
    tpu.vector_store %arg4[%c0_11, %c2, %c0_12, %c0_13], %15 {strides = array<i32>} : memref<1x4x4x128xf32, #tpu.memory_space<vmem>>, vector<1x1x4x128xf32>,
    %16 = vector.extract_strided_slice %3 {offsets = [0, 384], sizes = [4, 128], strides = [1, 1]} : vector<4x512xf32> to vector<4x128xf32>
    %c0_14 = arith.constant 0 : index
    %c3 = arith.constant 3 : index
    %c0_15 = arith.constant 0 : index
    %c0_16 = arith.constant 0 : index
    %17 = vector.load %arg4[%c0_14, %c3, %c0_15, %c0_16] : memref<1x4x4x128xf32, #tpu.memory_space<vmem>>, vector<1x1x4x128xf32>
    %18 = vector.shape_cast %17 : vector<1x1x4x128xf32> to vector<4x128xf32>
    %19 = vector.shape_cast %16 : vector<4x128xf32> to vector<1x1x4x128xf32>
    tpu.vector_store %arg4[%c0_14, %c3, %c0_15, %c0_16], %19 {strides = array<i32>} : memref<1x4x4x128xf32, #tpu.memory_space<vmem>>, vector<1x1x4x128xf32>,
    return
  }
  func.func @transform_0(%arg0: i32, %arg1: i32) -> (i32, i32, i32) {
    %c0_i32 = arith.constant 0 : i32
    %c0_i32_0 = arith.constant 0 : i32
    return %arg0, %arg1, %c0_i32 : i32, i32, i32
  }
  func.func @transform_1(%arg0: i32, %arg1: i32) -> (i32, i32) {
    %c0_i32 = arith.constant 0 : i32
    %c0_i32_0 = arith.constant 0 : i32
    %c0_i32_1 = arith.constant 0 : i32
    return %c0_i32, %c0_i32_0 : i32, i32
  }
  func.func @transform_2(%arg0: i32, %arg1: i32) -> (i32, i32, i32, i32) {
    %c0_i32 = arith.constant 0 : i32
    %c0_i32_0 = arith.constant 0 : i32
    %c0_i32_1 = arith.constant 0 : i32
    return %arg0, %c0_i32, %arg1, %c0_i32_0 : i32, i32, i32, i32
  }
}

</mosaic_0001>

<llo_original>
// kernel: tpu_custom_call.1
$region0: #{tpu_custom_call.1}
  #allocation0 [shape = 'u32[]', space=smem, size = 0x4, offset = 0x4, fixed_abs, tag = 'smem constant byte address 0x4 - core index']
  #allocation1 [shape = 'u32[144,128]{1,0:T(1,128)}', space=vmem, size = 0x12000, scoped, tag = 'internal scratch']
  %s0 = inlined_call_operand.hbm [shape: f32[2,4,512], index: 0, kind: input, shape index: {}]
  %s1 = inlined_call_operand.hbm [shape: f32[512,512], index: 1, kind: input, shape index: {}]
  %s2 = inlined_call_operand.hbm [shape: f32[2,4,4,128], index: 2, kind: output, shape index: {}]
  %s3 = sld [smem:[#allocation0]]
  $region49: #{tpu_custom_call.1} parent=0
    _
  %s5 = ssub.s32 1, %s3
  %s6 = scalar_select 0, %s5, %s3
  $region1: #{tpu_custom_call.1} parent=0
    #allocation2 [shape = 'u8[16384]{0}', space=vmem, size = 0x4000, scoped, tag = 'input window, operand 0']
    #allocation3 [shape = 's32[2]{0}', space=sflag, size = 0x8, scoped, tag = 'scoped memory for tpu_custom_call.1']
    #allocation4 [shape = 's32[2]{0}', space=sflag, size = 0x8, scoped, tag = 'scoped memory for tpu_custom_call.1']
    #allocation5 [shape = 'u8[1048576]{0}', space=vmem, size = 0x100000, scoped, tag = 'input window, operand 1, single buffered']
    #allocation6 [shape = 's32[1]{0}', space=sflag, size = 0x4, scoped, tag = 'scoped memory for tpu_custom_call.1']
    #allocation7 [shape = 'u8[16384]{0}', space=vmem, size = 0x4000, scoped, tag = 'output window, operand 0']
    %7 = vsyncpa [#allocation3], 0
    %s8 = scalar_lea.sflag [#allocation3], 1
    %9 = vsyncpa %s8, 0
    %10 = vsyncpa [#allocation6], 0
    %11 = vsyncpa [#allocation4], 0
    %s12 = scalar_lea.sflag [#allocation4], 1
    %13 = vsyncpa %s12, 0
    loop: start=0, step=1, limit=4
    $region2: #{tpu_custom_call.1} parent=1 // loop_pre_header
      _
    $region3: #{tpu_custom_call.1} parent=1 // loop_header
      %s15 = sphi 0, %s19
      %p16 = scmp.ge.s32.totalorder %s15, 4
      %s22 = sphi 0, %s34
      %s23 = sphi 0, %s30
      %s24 = sphi 0, %s22
      %s25 = sphi 0, %s23
      %s26 = sphi 0, %s24
      %s27 = sphi 0, %s25
      %s39 = sphi 0, %s41
      %s42 = sphi 0, %s39
      %s43 = sphi 0, %s42
      %s59 = sphi 0, %s43
      %s63 = sphi 0, %s63
      %s65 = sphi 0, %s63
      %s66 = sphi 0, %s65
      %s80 = sphi 0, %s66
      %s88 = sphi 0, %s90
      %s91 = sphi 0, %s88
      %s92 = sphi 0, %s91
      %s108 = sphi 0, %s92
    $region4: #{tpu_custom_call.1} parent=1 // loop_header_branch
      %18 = sbr.rel (%p16) target = $region8
    $region5: #{tpu_custom_call.1} parent=1 // loop_body
      %s20 = ssub.s32 %s15, 1
      %s21 = ssub.s32 %s15, 2
      %s28 = sadd.s32 1, %s23
      %p29 = scmp.ge.s32.totalorder %s28, 1
      %s30 = scalar_select %p29, 0, %s28
      %s31 = sadd.s32 1, %s22
      %s32 = scalar_select %p29, %s31, %s22
      %p33 = scmp.ge.s32.totalorder %s32, 2
      %s34 = scalar_select %p33, 0, %s32
      %s35 = ssub.s32 %s22, %s34
      %s36 = ssub.s32 %s23, %s30
      %s37 = sor.u32 %s35, %s36
      %p38 = scmp.eq.s32.totalorder %s37, 0
      %s40 = sadd.s32 %s39, 1
      %s41 = scalar_select %p38, %s39, %s40
      %p44 = pneg %p38
      %p45 = scmp.eq.s32.totalorder %s15, 1
      %p46 = por %p44, %p45
      %p47 = scmp.ne.s32.totalorder %s39, %s42
      %p48 = scmp.eq.s32.totalorder %s15, 0
      %p49 = por %p47, %p48
      %p50 = scmp.ne.s32.totalorder %s39, %s42
      %p51 = scmp.eq.s32.totalorder %s20, 1
      %p52 = por %p50, %p51
      %p53 = scmp.ne.s32.totalorder %s42, %s43
      %p54 = scmp.eq.s32.totalorder %s20, 0
      %p55 = por %p53, %p54
      %p56 = scmp.ne.s32.totalorder %s42, %s43
      %p57 = scmp.eq.s32.totalorder %s21, 1
      %p58 = por %p56, %p57
      %p60 = scmp.ne.s32.totalorder %s43, %s59
      %p61 = scmp.eq.s32.totalorder %s21, 0
      %p62 = por %p60, %p61
      %s64 = sadd.s32 %s63, 1
      %p67 = scmp.eq.s32.totalorder %s15, 1
      %p68 = scmp.ne.s32.totalorder %s63, %s65
      %p69 = scmp.eq.s32.totalorder %s15, 0
      %p70 = por %p68, %p69
      %p71 = scmp.ne.s32.totalorder %s63, %s65
      %p72 = scmp.eq.s32.totalorder %s20, 1
      %p73 = por %p71, %p72
      %p74 = scmp.ne.s32.totalorder %s65, %s66
      %p75 = scmp.eq.s32.totalorder %s20, 0
      %p76 = por %p74, %p75
      %p77 = scmp.ne.s32.totalorder %s65, %s66
      %p78 = scmp.eq.s32.totalorder %s21, 1
      %p79 = por %p77, %p78
      %p81 = scmp.ne.s32.totalorder %s66, %s80
      %p82 = scmp.eq.s32.totalorder %s21, 0
      %p83 = por %p81, %p82
      %s84 = ssub.s32 %s22, %s34
      %s85 = ssub.s32 %s23, %s30
      %s86 = sor.u32 %s84, %s85
      %p87 = scmp.eq.s32.totalorder %s86, 0
      %s89 = sadd.s32 %s88, 1
      %s90 = scalar_select %p87, %s88, %s89
      %p93 = pneg %p87
      %p94 = scmp.eq.s32.totalorder %s15, 1
      %p95 = por %p93, %p94
      %p96 = scmp.ne.s32.totalorder %s88, %s91
      %p97 = scmp.eq.s32.totalorder %s15, 0
      %p98 = por %p96, %p97
      %p99 = scmp.ne.s32.totalorder %s88, %s91
      %p100 = scmp.eq.s32.totalorder %s20, 1
      %p101 = por %p99, %p100
      %p102 = scmp.ne.s32.totalorder %s91, %s92
      %p103 = scmp.eq.s32.totalorder %s20, 0
      %p104 = por %p102, %p103
      %p105 = scmp.ne.s32.totalorder %s91, %s92
      %p106 = scmp.eq.s32.totalorder %s21, 1
      %p107 = por %p105, %p106
      %p109 = scmp.ne.s32.totalorder %s92, %s108
      %p110 = scmp.eq.s32.totalorder %s21, 0
      %p111 = por %p109, %p110
      %p112 = scmp.le.s32.totalorder 1, %s15
      %p113 = scmp.lt.s32.totalorder %s15, 3
      %p114 = pnand %p112, %p113
      %p115 = pneg %p114
      // Predicated region
      $region9: #{tpu_custom_call.1} parent=5 // pred_check
        _
      $region10: #{tpu_custom_call.1} parent=5 // pred_check_branch
        %117 = sbr.rel (%p114) target = $region12
      $region11: #{tpu_custom_call.1} parent=5 // pred_region
        %s118 = ssub.s32 %s15, 1
        // Predicated region
        $region13: #{tpu_custom_call.1} parent=11 // pred_check
          %p119 = pneg %p76
        $region14: #{tpu_custom_call.1} parent=11 // pred_check_branch
          %121 = sbr.rel (%p119) target = $region16
        $region15: #{tpu_custom_call.1} parent=11 // pred_region
          %s123 = ssub.s32 32768, 32768
          %124 = vsyncadd [#allocation6], %s123
          %s125 = sshll.u32 [#allocation5], 4
          %s126 = int_to_ptr.vmem [resolvable:$true] %s125
          %131 = dma.hbm_to_vmem [thread:$0]  %s1, 32768, %s126, [#allocation6], 512, 512, 32
        $region16: #{tpu_custom_call.1} parent=11 // pred_fallthru
          _
      $region12: #{tpu_custom_call.1} parent=5 // pred_fallthru
        _
      %p132 = scmp.lt.s32.totalorder %s15, 2
      // Predicated region
      $region17: #{tpu_custom_call.1} parent=5 // pred_check
        %p133 = pneg %p132
      $region18: #{tpu_custom_call.1} parent=5 // pred_check_branch
        %135 = sbr.rel (%p133) target = $region20
      $region19: #{tpu_custom_call.1} parent=5 // pred_region
        // Predicated region
        $region21: #{tpu_custom_call.1} parent=19 // pred_check
          %p136 = pneg %p49
        $region22: #{tpu_custom_call.1} parent=19 // pred_check_branch
          %138 = sbr.rel (%p136) target = $region24
        $region23: #{tpu_custom_call.1} parent=19 // pred_region
          %s139 = sand.u32 %s39, 1
          %s140 = scalar_lea.sflag [#allocation3], %s139
          %s141 = sand.u32 %s39, 1
          %s142 = smul.addr %s141, 16
          %s143 = scalar_lea.vmem [#allocation2], %s142
          %s145 = ssub.s32 256, 256
          %146 = vsyncadd %s140, %s145
          %s147 = smul.addr %s23, 4
          %s148 = smul.addr %s22, 4
          %s149 = sadd.s32 %s147, %s148
          %s150 = smul.addr %s149, 64
          %s151 = scalar_lea.hbm %s0, %s150
          %s153 = sshll.u32 %s143, 4
          %s154 = int_to_ptr.vmem [resolvable:$true] %s153
          %156 = dma.hbm_to_vmem [thread:$0]  %s151, 256, %s154, %s140
        $region24: #{tpu_custom_call.1} parent=19 // pred_fallthru
          _
      $region20: #{tpu_custom_call.1} parent=5 // pred_fallthru
        _
      %p157 = scmp.le.s32.totalorder 1, %s15
      %p158 = scmp.lt.s32.totalorder %s15, 3
      %p159 = pnand %p157, %p158
      %p160 = pneg %p159
      // Predicated region
      $region25: #{tpu_custom_call.1} parent=5 // pred_check
        _
      $region26: #{tpu_custom_call.1} parent=5 // pred_check_branch
        %162 = sbr.rel (%p159) target = $region28
      $region27: #{tpu_custom_call.1} parent=5 // pred_region
        %s163 = ssub.s32 %s15, 1
        %s164 = sand.u32 %s42, 1
        %s165 = scalar_lea.sflag [#allocation3], %s164
        %s166 = sand.u32 %s42, 1
        %s167 = smul.addr %s166, 16
        %s168 = scalar_lea.vmem [#allocation2], %s167
        // Predicated region
        $region29: #{tpu_custom_call.1} parent=27 // pred_check
          %p169 = pneg %p55
        $region30: #{tpu_custom_call.1} parent=27 // pred_check_branch
          %171 = sbr.rel (%p169) target = $region32
        $region31: #{tpu_custom_call.1} parent=27 // pred_region
          %172 = dma.done %s165, 256
        $region32: #{tpu_custom_call.1} parent=27 // pred_fallthru
          _
        // Predicated region
        $region33: #{tpu_custom_call.1} parent=27 // pred_check
          %p173 = pneg %p76
        $region34: #{tpu_custom_call.1} parent=27 // pred_check_branch
          %175 = sbr.rel (%p173) target = $region36
        $region35: #{tpu_custom_call.1} parent=27 // pred_region
          %176 = dma.done [#allocation6], 32768
        $region36: #{tpu_custom_call.1} parent=27 // pred_fallthru
          _
        %s177 = sand.u32 %s42, 1
        %s178 = scalar_lea.sflag [#allocation3], %s177
        %s179 = sand.u32 %s42, 1
        %s180 = smul.addr %s179, 16
        %s181 = scalar_lea.vmem [#allocation2], %s180
        %p182 = pneg %p55
        %p183 = pneg %p52
        %p184 = pneg %p76
        %p185 = pneg %p73
        %p186 = pneg %p104
        %p187 = pneg %p101
        %s188 = sand.u32 %s91, 1
        %s189 = scalar_lea.sflag [#allocation4], %s188
        %s190 = sand.u32 %s91, 1
        %s191 = smul.addr %s190, 16
        %s192 = scalar_lea.vmem [#allocation7], %s191
        %v193 = vld [vmem:[%s168] sm:$0xff]
        %v194 = vld [vmem:[%s168 + $0x8] sm:$0xff]
        %v195 = vld [vmem:[#allocation5] sm:$0xff]
        %v196 = vld [vmem:[#allocation5 + $0x8] sm:$0xff]
        %v197 = vld [vmem:[#allocation5 + $0x10] sm:$0xff]
        %v198 = vld [vmem:[#allocation5 + $0x18] sm:$0xff]
        %v199 = vld [vmem:[#allocation5 + $0x20] sm:$0xff]
        %v200 = vld [vmem:[#allocation5 + $0x28] sm:$0xff]
        %v201 = vld [vmem:[#allocation5 + $0x30] sm:$0xff]
        %v202 = vld [vmem:[#allocation5 + $0x38] sm:$0xff]
        %v203 = vld [vmem:[#allocation5 + $0x40] sm:$0xff]
        %v204 = vld [vmem:[#allocation5 + $0x48] sm:$0xff]
        %v205 = vld [vmem:[#allocation5 + $0x50] sm:$0xff]
        %v206 = vld [vmem:[#allocation5 + $0x58] sm:$0xff]
        %v207 = vld [vmem:[#allocation5 + $0x60] sm:$0xff]
        %v208 = vld [vmem:[#allocation5 + $0x68] sm:$0xff]
        %v209 = vld [vmem:[#allocation5 + $0x70] sm:$0xff]
        %v210 = vld [vmem:[#allocation5 + $0x78] sm:$0xff]
        %v211 = vld [vmem:[#allocation5 + $0x80] sm:$0xff]
        %v212 = vld [vmem:[#allocation5 + $0x88] sm:$0xff]
        %v213 = vld [vmem:[#allocation5 + $0x90] sm:$0xff]
        %v214 = vld [vmem:[#allocation5 + $0x98] sm:$0xff]
        %v215 = vld [vmem:[#allocation5 + $0xa0] sm:$0xff]
        %v216 = vld [vmem:[#allocation5 + $0xa8] sm:$0xff]
        %v217 = vld [vmem:[#allocation5 + $0xb0] sm:$0xff]
        %v218 = vld [vmem:[#allocation5 + $0xb8] sm:$0xff]
        %v219 = vld [vmem:[#allocation5 + $0xc0] sm:$0xff]
        %v220 = vld [vmem:[#allocation5 + $0xc8] sm:$0xff]
        %v221 = vld [vmem:[#allocation5 + $0xd0] sm:$0xff]
        %v222 = vld [vmem:[#allocation5 + $0xd8] sm:$0xff]
        %v223 = vld [vmem:[#allocation5 + $0xe0] sm:$0xff]
        %v224 = vld [vmem:[#allocation5 + $0xe8] sm:$0xff]
        %v225 = vld [vmem:[#allocation5 + $0xf0] sm:$0xff]
        %v226 = vld [vmem:[#allocation5 + $0xf8] sm:$0xff]
        %v227 = vld [vmem:[#allocation5 + $0x100] sm:$0xff]
        %v228 = vld [vmem:[#allocation5 + $0x108] sm:$0xff]
        %v229 = vld [vmem:[#allocation5 + $0x110] sm:$0xff]
        %v230 = vld [vmem:[#allocation5 + $0x118] sm:$0xff]
        %v231 = vld [vmem:[#allocation5 + $0x120] sm:$0xff]
        %v232 = vld [vmem:[#allocation5 + $0x128] sm:$0xff]
        %v233 = vld [vmem:[#allocation5 + $0x130] sm:$0xff]
        %v234 = vld [vmem:[#allocation5 + $0x138] sm:$0xff]
        %v235 = vld [vmem:[#allocation5 + $0x140] sm:$0xff]
        %v236 = vld [vmem:[#allocation5 + $0x148] sm:$0xff]
        %v237 = vld [vmem:[#allocation5 + $0x150] sm:$0xff]
        %v238 = vld [vmem:[#allocation5 + $0x158] sm:$0xff]
        %v239 = vld [vmem:[#allocation5 + $0x160] sm:$0xff]
        %v240 = vld [vmem:[#allocation5 + $0x168] sm:$0xff]
        %v241 = vld [vmem:[#allocation5 + $0x170] sm:$0xff]
        %v242 = vld [vmem:[#allocation5 + $0x178] sm:$0xff]
        %v243 = vld [vmem:[#allocation5 + $0x180] sm:$0xff]
        %v244 = vld [vmem:[#allocation5 + $0x188] sm:$0xff]
        %v245 = vld [vmem:[#allocation5 + $0x190] sm:$0xff]
        %v246 = vld [vmem:[#allocation5 + $0x198] sm:$0xff]
        %v247 = vld [vmem:[#allocation5 + $0x1a0] sm:$0xff]
        %v248 = vld [vmem:[#allocation5 + $0x1a8] sm:$0xff]
        %v249 = vld [vmem:[#allocation5 + $0x1b0] sm:$0xff]
        %v250 = vld [vmem:[#allocation5 + $0x1b8] sm:$0xff]
        %v251 = vld [vmem:[#allocation5 + $0x1c0] sm:$0xff]
        %v252 = vld [vmem:[#allocation5 + $0x1c8] sm:$0xff]
        %v253 = vld [vmem:[#allocation5 + $0x1d0] sm:$0xff]
        %v254 = vld [vmem:[#allocation5 + $0x1d8] sm:$0xff]
        %v255 = vld [vmem:[#allocation5 + $0x1e0] sm:$0xff]
        %v256 = vld [vmem:[#allocation5 + $0x1e8] sm:$0xff]
        %v257 = vld [vmem:[#allocation5 + $0x1f0] sm:$0xff]
        %v258 = vld [vmem:[#allocation5 + $0x1f8] sm:$0xff]
        %v259 = vld [vmem:[#allocation5 + $0x200] sm:$0xff]
        %v260 = vld [vmem:[#allocation5 + $0x208] sm:$0xff]
        %v261 = vld [vmem:[#allocation5 + $0x210] sm:$0xff]
        %v262 = vld [vmem:[#allocation5 + $0x218] sm:$0xff]
        %v263 = vld [vmem:[#allocation5 + $0x220] sm:$0xff]
        %v264 = vld [vmem:[#allocation5 + $0x228] sm:$0xff]
        %v265 = vld [vmem:[#allocation5 + $0x230] sm:$0xff]
        %v266 = vld [vmem:[#allocation5 + $0x238] sm:$0xff]
        %v267 = vld [vmem:[#allocation5 + $0x240] sm:$0xff]
        %v268 = vld [vmem:[#allocation5 + $0x248] sm:$0xff]
        %v269 = vld [vmem:[#allocation5 + $0x250] sm:$0xff]
        %v270 = vld [vmem:[#allocation5 + $0x258] sm:$0xff]
        %v271 = vld [vmem:[#allocation5 + $0x260] sm:$0xff]
        %v272 = vld [vmem:[#allocation5 + $0x268] sm:$0xff]
        %v273 = vld [vmem:[#allocation5 + $0x270] sm:$0xff]
        %v274 = vld [vmem:[#allocation5 + $0x278] sm:$0xff]
        %v275 = vld [vmem:[#allocation5 + $0x280] sm:$0xff]
        %v276 = vld [vmem:[#allocation5 + $0x288] sm:$0xff]
        %v277 = vld [vmem:[#allocation5 + $0x290] sm:$0xff]
        %v278 = vld [vmem:[#allocation5 + $0x298] sm:$0xff]
        %v279 = vld [vmem:[#allocation5 + $0x2a0] sm:$0xff]
        %v280 = vld [vmem:[#allocation5 + $0x2a8] sm:$0xff]
        %v281 = vld [vmem:[#allocation5 + $0x2b0] sm:$0xff]
        %v282 = vld [vmem:[#allocation5 + $0x2b8] sm:$0xff]
        %v283 = vld [vmem:[#allocation5 + $0x2c0] sm:$0xff]
        %v284 = vld [vmem:[#allocation5 + $0x2c8] sm:$0xff]
        %v285 = vld [vmem:[#allocation5 + $0x2d0] sm:$0xff]
        %v286 = vld [vmem:[#allocation5 + $0x2d8] sm:$0xff]
        %v287 = vld [vmem:[#allocation5 + $0x2e0] sm:$0xff]
        %v288 = vld [vmem:[#allocation5 + $0x2e8] sm:$0xff]
        %v289 = vld [vmem:[#allocation5 + $0x2f0] sm:$0xff]
        %v290 = vld [vmem:[#allocation5 + $0x2f8] sm:$0xff]
        %v291 = vld [vmem:[#allocation5 + $0x300] sm:$0xff]
        %v292 = vld [vmem:[#allocation5 + $0x308] sm:$0xff]
        %v293 = vld [vmem:[#allocation5 + $0x310] sm:$0xff]
        %v294 = vld [vmem:[#allocation5 + $0x318] sm:$0xff]
        %v295 = vld [vmem:[#allocation5 + $0x320] sm:$0xff]
        %v296 = vld [vmem:[#allocation5 + $0x328] sm:$0xff]
        %v297 = vld [vmem:[#allocation5 + $0x330] sm:$0xff]
        %v298 = vld [vmem:[#allocation5 + $0x338] sm:$0xff]
        %v299 = vld [vmem:[#allocation5 + $0x340] sm:$0xff]
        %v300 = vld [vmem:[#allocation5 + $0x348] sm:$0xff]
        %v301 = vld [vmem:[#allocation5 + $0x350] sm:$0xff]
        %v302 = vld [vmem:[#allocation5 + $0x358] sm:$0xff]
        %v303 = vld [vmem:[#allocation5 + $0x360] sm:$0xff]
        %v304 = vld [vmem:[#allocation5 + $0x368] sm:$0xff]
        %v305 = vld [vmem:[#allocation5 + $0x370] sm:$0xff]
        %v306 = vld [vmem:[#allocation5 + $0x378] sm:$0xff]
        %v307 = vld [vmem:[#allocation5 + $0x380] sm:$0xff]
        %v308 = vld [vmem:[#allocation5 + $0x388] sm:$0xff]
        %v309 = vld [vmem:[#allocation5 + $0x390] sm:$0xff]
        %v310 = vld [vmem:[#allocation5 + $0x398] sm:$0xff]
        %v311 = vld [vmem:[#allocation5 + $0x3a0] sm:$0xff]
        %v312 = vld [vmem:[#allocation5 + $0x3a8] sm:$0xff]
        %v313 = vld [vmem:[#allocation5 + $0x3b0] sm:$0xff]
        %v314 = vld [vmem:[#allocation5 + $0x3b8] sm:$0xff]
        %v315 = vld [vmem:[#allocation5 + $0x3c0] sm:$0xff]
        %v316 = vld [vmem:[#allocation5 + $0x3c8] sm:$0xff]
        %v317 = vld [vmem:[#allocation5 + $0x3d0] sm:$0xff]
        %v318 = vld [vmem:[#allocation5 + $0x3d8] sm:$0xff]
        %v319 = vld [vmem:[#allocation5 + $0x3e0] sm:$0xff]
        %v320 = vld [vmem:[#allocation5 + $0x3e8] sm:$0xff]
        %v321 = vld [vmem:[#allocation5 + $0x3f0] sm:$0xff]
        %v322 = vld [vmem:[#allocation5 + $0x3f8] sm:$0xff]
        %v323 = vld [vmem:[#allocation5 + $0x400] sm:$0xff]
        %v324 = vld [vmem:[#allocation5 + $0x408] sm:$0xff]
        %v325 = vld [vmem:[#allocation5 + $0x410] sm:$0xff]
        %v326 = vld [vmem:[#allocation5 + $0x418] sm:$0xff]
        %v327 = vld [vmem:[#allocation5 + $0x420] sm:$0xff]
        %v328 = vld [vmem:[#allocation5 + $0x428] sm:$0xff]
        %v329 = vld [vmem:[#allocation5 + $0x430] sm:$0xff]
        %v330 = vld [vmem:[#allocation5 + $0x438] sm:$0xff]
        %v331 = vld [vmem:[#allocation5 + $0x440] sm:$0xff]
        %v332 = vld [vmem:[#allocation5 + $0x448] sm:$0xff]
        %v333 = vld [vmem:[#allocation5 + $0x450] sm:$0xff]
        %v334 = vld [vmem:[#allocation5 + $0x458] sm:$0xff]
        %v335 = vld [vmem:[#allocation5 + $0x460] sm:$0xff]
        %v336 = vld [vmem:[#allocation5 + $0x468] sm:$0xff]
        %v337 = vld [vmem:[#allocation5 + $0x470] sm:$0xff]
        %v338 = vld [vmem:[#allocation5 + $0x478] sm:$0xff]
        %v339 = vld [vmem:[#allocation5 + $0x480] sm:$0xff]
        %v340 = vld [vmem:[#allocation5 + $0x488] sm:$0xff]
        %v341 = vld [vmem:[#allocation5 + $0x490] sm:$0xff]
        %v342 = vld [vmem:[#allocation5 + $0x498] sm:$0xff]
        %v343 = vld [vmem:[#allocation5 + $0x4a0] sm:$0xff]
        %v344 = vld [vmem:[#allocation5 + $0x4a8] sm:$0xff]
        %v345 = vld [vmem:[#allocation5 + $0x4b0] sm:$0xff]
        %v346 = vld [vmem:[#allocation5 + $0x4b8] sm:$0xff]
        %v347 = vld [vmem:[#allocation5 + $0x4c0] sm:$0xff]
        %v348 = vld [vmem:[#allocation5 + $0x4c8] sm:$0xff]
        %v349 = vld [vmem:[#allocation5 + $0x4d0] sm:$0xff]
        %v350 = vld [vmem:[#allocation5 + $0x4d8] sm:$0xff]
        %v351 = vld [vmem:[#allocation5 + $0x4e0] sm:$0xff]
        %v352 = vld [vmem:[#allocation5 + $0x4e8] sm:$0xff]
        %v353 = vld [vmem:[#allocation5 + $0x4f0] sm:$0xff]
        %v354 = vld [vmem:[#allocation5 + $0x4f8] sm:$0xff]
        %v355 = vld [vmem:[#allocation5 + $0x500] sm:$0xff]
        %v356 = vld [vmem:[#allocation5 + $0x508] sm:$0xff]
        %v357 = vld [vmem:[#allocation5 + $0x510] sm:$0xff]
        %v358 = vld [vmem:[#allocation5 + $0x518] sm:$0xff]
        %v359 = vld [vmem:[#allocation5 + $0x520] sm:$0xff]
        %v360 = vld [vmem:[#allocation5 + $0x528] sm:$0xff]
        %v361 = vld [vmem:[#allocation5 + $0x530] sm:$0xff]
        %v362 = vld [vmem:[#allocation5 + $0x538] sm:$0xff]
        %v363 = vld [vmem:[#allocation5 + $0x540] sm:$0xff]
        %v364 = vld [vmem:[#allocation5 + $0x548] sm:$0xff]
        %v365 = vld [vmem:[#allocation5 + $0x550] sm:$0xff]
        %v366 = vld [vmem:[#allocation5 + $0x558] sm:$0xff]
        %v367 = vld [vmem:[#allocation5 + $0x560] sm:$0xff]
        %v368 = vld [vmem:[#allocation5 + $0x568] sm:$0xff]
        %v369 = vld [vmem:[#allocation5 + $0x570] sm:$0xff]
        %v370 = vld [vmem:[#allocation5 + $0x578] sm:$0xff]
        %v371 = vld [vmem:[#allocation5 + $0x580] sm:$0xff]
        %v372 = vld [vmem:[#allocation5 + $0x588] sm:$0xff]
        %v373 = vld [vmem:[#allocation5 + $0x590] sm:$0xff]
        %v374 = vld [vmem:[#allocation5 + $0x598] sm:$0xff]
        %v375 = vld [vmem:[#allocation5 + $0x5a0] sm:$0xff]
        %v376 = vld [vmem:[#allocation5 + $0x5a8] sm:$0xff]
        %v377 = vld [vmem:[#allocation5 + $0x5b0] sm:$0xff]
        %v378 = vld [vmem:[#allocation5 + $0x5b8] sm:$0xff]
        %v379 = vld [vmem:[#allocation5 + $0x5c0] sm:$0xff]
        %v380 = vld [vmem:[#allocation5 + $0x5c8] sm:$0xff]
        %v381 = vld [vmem:[#allocation5 + $0x5d0] sm:$0xff]
        %v382 = vld [vmem:[#allocation5 + $0x5d8] sm:$0xff]
        %v383 = vld [vmem:[#allocation5 + $0x5e0] sm:$0xff]
        %v384 = vld [vmem:[#allocation5 + $0x5e8] sm:$0xff]
        %v385 = vld [vmem:[#allocation5 + $0x5f0] sm:$0xff]
        %v386 = vld [vmem:[#allocation5 + $0x5f8] sm:$0xff]
        %v387 = vld [vmem:[#allocation5 + $0x600] sm:$0xff]
        %v388 = vld [vmem:[#allocation5 + $0x608] sm:$0xff]
        %v389 = vld [vmem:[#allocation5 + $0x610] sm:$0xff]
        %v390 = vld [vmem:[#allocation5 + $0x618] sm:$0xff]
        %v391 = vld [vmem:[#allocation5 + $0x620] sm:$0xff]
        %v392 = vld [vmem:[#allocation5 + $0x628] sm:$0xff]
        %v393 = vld [vmem:[#allocation5 + $0x630] sm:$0xff]
        %v394 = vld [vmem:[#allocation5 + $0x638] sm:$0xff]
        %v395 = vld [vmem:[#allocation5 + $0x640] sm:$0xff]
        %v396 = vld [vmem:[#allocation5 + $0x648] sm:$0xff]
        %v397 = vld [vmem:[#allocation5 + $0x650] sm:$0xff]
        %v398 = vld [vmem:[#allocation5 + $0x658] sm:$0xff]
        %v399 = vld [vmem:[#allocation5 + $0x660] sm:$0xff]
        %v400 = vld [vmem:[#allocation5 + $0x668] sm:$0xff]
        %v401 = vld [vmem:[#allocation5 + $0x670] sm:$0xff]
        %v402 = vld [vmem:[#allocation5 + $0x678] sm:$0xff]
        %v403 = vld [vmem:[#allocation5 + $0x680] sm:$0xff]
        %v404 = vld [vmem:[#allocation5 + $0x688] sm:$0xff]
        %v405 = vld [vmem:[#allocation5 + $0x690] sm:$0xff]
        %v406 = vld [vmem:[#allocation5 + $0x698] sm:$0xff]
        %v407 = vld [vmem:[#allocation5 + $0x6a0] sm:$0xff]
        %v408 = vld [vmem:[#allocation5 + $0x6a8] sm:$0xff]
        %v409 = vld [vmem:[#allocation5 + $0x6b0] sm:$0xff]
        %v410 = vld [vmem:[#allocation5 + $0x6b8] sm:$0xff]
        %v411 = vld [vmem:[#allocation5 + $0x6c0] sm:$0xff]
        %v412 = vld [vmem:[#allocation5 + $0x6c8] sm:$0xff]
        %v413 = vld [vmem:[#allocation5 + $0x6d0] sm:$0xff]
        %v414 = vld [vmem:[#allocation5 + $0x6d8] sm:$0xff]
        %v415 = vld [vmem:[#allocation5 + $0x6e0] sm:$0xff]
        %v416 = vld [vmem:[#allocation5 + $0x6e8] sm:$0xff]
        %v417 = vld [vmem:[#allocation5 + $0x6f0] sm:$0xff]
        %v418 = vld [vmem:[#allocation5 + $0x6f8] sm:$0xff]
        %v419 = vld [vmem:[#allocation5 + $0x700] sm:$0xff]
        %v420 = vld [vmem:[#allocation5 + $0x708] sm:$0xff]
        %v421 = vld [vmem:[#allocation5 + $0x710] sm:$0xff]
        %v422 = vld [vmem:[#allocation5 + $0x718] sm:$0xff]
        %v423 = vld [vmem:[#allocation5 + $0x720] sm:$0xff]
        %v424 = vld [vmem:[#allocation5 + $0x728] sm:$0xff]
        %v425 = vld [vmem:[#allocation5 + $0x730] sm:$0xff]
        %v426 = vld [vmem:[#allocation5 + $0x738] sm:$0xff]
        %v427 = vld [vmem:[#allocation5 + $0x740] sm:$0xff]
        %v428 = vld [vmem:[#allocation5 + $0x748] sm:$0xff]
        %v429 = vld [vmem:[#allocation5 + $0x750] sm:$0xff]
        %v430 = vld [vmem:[#allocation5 + $0x758] sm:$0xff]
        %v431 = vld [vmem:[#allocation5 + $0x760] sm:$0xff]
        %v432 = vld [vmem:[#allocation5 + $0x768] sm:$0xff]
        %v433 = vld [vmem:[#allocation5 + $0x770] sm:$0xff]
        %v434 = vld [vmem:[#allocation5 + $0x778] sm:$0xff]
        %v435 = vld [vmem:[#allocation5 + $0x780] sm:$0xff]
        %v436 = vld [vmem:[#allocation5 + $0x788] sm:$0xff]
        %v437 = vld [vmem:[#allocation5 + $0x790] sm:$0xff]
        %v438 = vld [vmem:[#allocation5 + $0x798] sm:$0xff]
        %v439 = vld [vmem:[#allocation5 + $0x7a0] sm:$0xff]
        %v440 = vld [vmem:[#allocation5 + $0x7a8] sm:$0xff]
        %v441 = vld [vmem:[#allocation5 + $0x7b0] sm:$0xff]
        %v442 = vld [vmem:[#allocation5 + $0x7b8] sm:$0xff]
        %v443 = vld [vmem:[#allocation5 + $0x7c0] sm:$0xff]
        %v444 = vld [vmem:[#allocation5 + $0x7c8] sm:$0xff]
        %v445 = vld [vmem:[#allocation5 + $0x7d0] sm:$0xff]
        %v446 = vld [vmem:[#allocation5 + $0x7d8] sm:$0xff]
        %v447 = vld [vmem:[#allocation5 + $0x7e0] sm:$0xff]
        %v448 = vld [vmem:[#allocation5 + $0x7e8] sm:$0xff]
        %v449 = vld [vmem:[#allocation5 + $0x7f0] sm:$0xff]
        %v450 = vld [vmem:[#allocation5 + $0x7f8] sm:$0xff]
        %v453 = vcombine.high %v193, %v193
        %v454 = vcombine.high %v194, %v194
        %457 = vmatprep.subr.mxu0 %v196
        %458 = vmatpush1.msra.mxu0 %v195
        %459 = vmatprep.subr.mxu0 %v200
        %460 = vmatpush1.msra.mxu0 %v199
        %461 = vmatprep.subr.mxu0 %v204
        %462 = vmatpush1.msra.mxu0 %v203
        %463 = vmatprep.subr.mxu0 %v208
        %464 = vmatpush1.msra.mxu0 %v207
        %465 = vmatprep.subr.mxu0 %v212
        %466 = vmatpush1.msra.mxu0 %v211
        %467 = vmatprep.subr.mxu0 %v216
        %468 = vmatpush1.msra.mxu0 %v215
        %469 = vmatprep.subr.mxu0 %v220
        %470 = vmatpush1.msra.mxu0 %v219
        %471 = vmatprep.subr.mxu0 %v224
        %472 = vmatpush1.msra.mxu0 %v223
        %473 = vmatprep.subr.mxu0 %v228
        %474 = vmatpush1.msra.mxu0 %v227
        %475 = vmatprep.subr.mxu0 %v232
        %476 = vmatpush1.msra.mxu0 %v231
        %477 = vmatprep.subr.mxu0 %v236
        %478 = vmatpush1.msra.mxu0 %v235
        %479 = vmatprep.subr.mxu0 %v240
        %480 = vmatpush1.msra.mxu0 %v239
        %481 = vmatprep.subr.mxu0 %v244
        %482 = vmatpush1.msra.mxu0 %v243
        %483 = vmatprep.subr.mxu0 %v248
        %484 = vmatpush1.msra.mxu0 %v247
        %485 = vmatprep.subr.mxu0 %v252
        %486 = vmatpush1.msra.mxu0 %v251
        %487 = vmatprep.subr.mxu0 %v256
        %488 = vmatpush1.msra.mxu0 %v255
        %489 = vmatprep.subr.mxu0 %v260
        %490 = vmatpush1.msra.mxu0 %v259
        %491 = vmatprep.subr.mxu0 %v264
        %492 = vmatpush1.msra.mxu0 %v263
        %493 = vmatprep.subr.mxu0 %v268
        %494 = vmatpush1.msra.mxu0 %v267
        %495 = vmatprep.subr.mxu0 %v272
        %496 = vmatpush1.msra.mxu0 %v271
        %497 = vmatprep.subr.mxu0 %v276
        %498 = vmatpush1.msra.mxu0 %v275
        %499 = vmatprep.subr.mxu0 %v280
        %500 = vmatpush1.msra.mxu0 %v279
        %501 = vmatprep.subr.mxu0 %v284
        %502 = vmatpush1.msra.mxu0 %v283
        %503 = vmatprep.subr.mxu0 %v288
        %504 = vmatpush1.msra.mxu0 %v287
        %505 = vmatprep.subr.mxu0 %v292
        %506 = vmatpush1.msra.mxu0 %v291
        %507 = vmatprep.subr.mxu0 %v296
        %508 = vmatpush1.msra.mxu0 %v295
        %509 = vmatprep.subr.mxu0 %v300
        %510 = vmatpush1.msra.mxu0 %v299
        %511 = vmatprep.subr.mxu0 %v304
        %512 = vmatpush1.msra.mxu0 %v303
        %513 = vmatprep.subr.mxu0 %v308
        %514 = vmatpush1.msra.mxu0 %v307
        %515 = vmatprep.subr.mxu0 %v312
        %516 = vmatpush1.msra.mxu0 %v311
        %517 = vmatprep.subr.mxu0 %v316
        %518 = vmatpush1.msra.mxu0 %v315
        %519 = vmatprep.subr.mxu0 %v320
        %520 = vmatpush1.msra.mxu0 %v319
        %521 = vmatprep.mubr.f32.mxu0 %v453
        %522 = vmatmul.mubr.f32.gmra.mrb[0].mxu0 %v193
        %v523 = vpop.f32.mrb[0].mxu0
        %v524 = vadd.f32 0.0, %v523
        %v525 = vpop.f32.mrb[0].mxu0
        %v526 = vadd.f32 0.0, %v525
        %527 = vdwg.mxu0
        %528 = vmatprep.subr.mxu0 %v324
        %529 = vmatpush1.msra.mxu0 %v323
        %530 = vmatprep.subr.mxu0 %v328
        %531 = vmatpush1.msra.mxu0 %v327
        %532 = vmatprep.subr.mxu0 %v332
        %533 = vmatpush1.msra.mxu0 %v331
        %534 = vmatprep.subr.mxu0 %v336
        %535 = vmatpush1.msra.mxu0 %v335
        %536 = vmatprep.subr.mxu0 %v340
        %537 = vmatpush1.msra.mxu0 %v339
        %538 = vmatprep.subr.mxu0 %v344
        %539 = vmatpush1.msra.mxu0 %v343
        %540 = vmatprep.subr.mxu0 %v348
        %541 = vmatpush1.msra.mxu0 %v347
        %542 = vmatprep.subr.mxu0 %v352
        %543 = vmatpush1.msra.mxu0 %v351
        %544 = vmatprep.subr.mxu0 %v356
        %545 = vmatpush1.msra.mxu0 %v355
        %546 = vmatprep.subr.mxu0 %v360
        %547 = vmatpush1.msra.mxu0 %v359
        %548 = vmatprep.subr.mxu0 %v364
        %549 = vmatpush1.msra.mxu0 %v363
        %550 = vmatprep.subr.mxu0 %v368
        %551 = vmatpush1.msra.mxu0 %v367
        %552 = vmatprep.subr.mxu0 %v372
        %553 = vmatpush1.msra.mxu0 %v371
        %554 = vmatprep.subr.mxu0 %v376
        %555 = vmatpush1.msra.mxu0 %v375
        %556 = vmatprep.subr.mxu0 %v380
        %557 = vmatpush1.msra.mxu0 %v379
        %558 = vmatprep.subr.mxu0 %v384
        %559 = vmatpush1.msra.mxu0 %v383
        %560 = vmatprep.subr.mxu0 %v388
        %561 = vmatpush1.msra.mxu0 %v387
        %562 = vmatprep.subr.mxu0 %v392
        %563 = vmatpush1.msra.mxu0 %v391
        %564 = vmatprep.subr.mxu0 %v396
        %565 = vmatpush1.msra.mxu0 %v395
        %566 = vmatprep.subr.mxu0 %v400
        %567 = vmatpush1.msra.mxu0 %v399
        %568 = vmatprep.subr.mxu0 %v404
        %569 = vmatpush1.msra.mxu0 %v403
        %570 = vmatprep.subr.mxu0 %v408
        %571 = vmatpush1.msra.mxu0 %v407
        %572 = vmatprep.subr.mxu0 %v412
        %573 = vmatpush1.msra.mxu0 %v411
        %574 = vmatprep.subr.mxu0 %v416
        %575 = vmatpush1.msra.mxu0 %v415
        %576 = vmatprep.subr.mxu0 %v420
        %577 = vmatpush1.msra.mxu0 %v419
        %578 = vmatprep.subr.mxu0 %v424
        %579 = vmatpush1.msra.mxu0 %v423
        %580 = vmatprep.subr.mxu0 %v428
        %581 = vmatpush1.msra.mxu0 %v427
        %582 = vmatprep.subr.mxu0 %v432
        %583 = vmatpush1.msra.mxu0 %v431
        %584 = vmatprep.subr.mxu0 %v436
        %585 = vmatpush1.msra.mxu0 %v435
        %586 = vmatprep.subr.mxu0 %v440
        %587 = vmatpush1.msra.mxu0 %v439
        %588 = vmatprep.subr.mxu0 %v444
        %589 = vmatpush1.msra.mxu0 %v443
        %590 = vmatprep.subr.mxu0 %v448
        %591 = vmatpush1.msra.mxu0 %v447
        %592 = vmatprep.mubr.f32.mxu0 %v454
        %593 = vmatmul.mubr.f32.gmra.mrb[0].mxu0 %v194
        %v594 = vpop.f32.mrb[0].mxu0
        %v595 = vadd.f32 %v524, %v594
        %v596 = vpop.f32.mrb[0].mxu0
        %v597 = vadd.f32 %v526, %v596
        %598 = vdwg.mxu0
        %599 = vmatprep.subr.mxu0 %v198
        %600 = vmatpush1.msra.mxu0 %v197
        %601 = vmatprep.subr.mxu0 %v202
        %602 = vmatpush1.msra.mxu0 %v201
        %603 = vmatprep.subr.mxu0 %v206
        %604 = vmatpush1.msra.mxu0 %v205
        %605 = vmatprep.subr.mxu0 %v210
        %606 = vmatpush1.msra.mxu0 %v209
        %607 = vmatprep.subr.mxu0 %v214
        %608 = vmatpush1.msra.mxu0 %v213
        %609 = vmatprep.subr.mxu0 %v218
        %610 = vmatpush1.msra.mxu0 %v217
        %611 = vmatprep.subr.mxu0 %v222
        %612 = vmatpush1.msra.mxu0 %v221
        %613 = vmatprep.subr.mxu0 %v226
        %614 = vmatpush1.msra.mxu0 %v225
        %615 = vmatprep.subr.mxu0 %v230
        %616 = vmatpush1.msra.mxu0 %v229
        %617 = vmatprep.subr.mxu0 %v234
        %618 = vmatpush1.msra.mxu0 %v233
        %619 = vmatprep.subr.mxu0 %v238
        %620 = vmatpush1.msra.mxu0 %v237
        %621 = vmatprep.subr.mxu0 %v242
        %622 = vmatpush1.msra.mxu0 %v241
        %623 = vmatprep.subr.mxu0 %v246
        %624 = vmatpush1.msra.mxu0 %v245
        %625 = vmatprep.subr.mxu0 %v250
        %626 = vmatpush1.msra.mxu0 %v249
        %627 = vmatprep.subr.mxu0 %v254
        %628 = vmatpush1.msra.mxu0 %v253
        %629 = vmatprep.subr.mxu0 %v258
        %630 = vmatpush1.msra.mxu0 %v257
        %631 = vmatprep.subr.mxu0 %v262
        %632 = vmatpush1.msra.mxu0 %v261
        %633 = vmatprep.subr.mxu0 %v266
        %634 = vmatpush1.msra.mxu0 %v265
        %635 = vmatprep.subr.mxu0 %v270
        %636 = vmatpush1.msra.mxu0 %v269
        %637 = vmatprep.subr.mxu0 %v274
        %638 = vmatpush1.msra.mxu0 %v273
        %639 = vmatprep.subr.mxu0 %v278
        %640 = vmatpush1.msra.mxu0 %v277
        %641 = vmatprep.subr.mxu0 %v282
        %642 = vmatpush1.msra.mxu0 %v281
        %643 = vmatprep.subr.mxu0 %v286
        %644 = vmatpush1.msra.mxu0 %v285
        %645 = vmatprep.subr.mxu0 %v290
        %646 = vmatpush1.msra.mxu0 %v289
        %647 = vmatprep.subr.mxu0 %v294
        %648 = vmatpush1.msra.mxu0 %v293
        %649 = vmatprep.subr.mxu0 %v298
        %650 = vmatpush1.msra.mxu0 %v297
        %651 = vmatprep.subr.mxu0 %v302
        %652 = vmatpush1.msra.mxu0 %v301
        %653 = vmatprep.subr.mxu0 %v306
        %654 = vmatpush1.msra.mxu0 %v305
        %655 = vmatprep.subr.mxu0 %v310
        %656 = vmatpush1.msra.mxu0 %v309
        %657 = vmatprep.subr.mxu0 %v314
        %658 = vmatpush1.msra.mxu0 %v313
        %659 = vmatprep.subr.mxu0 %v318
        %660 = vmatpush1.msra.mxu0 %v317
        %661 = vmatprep.subr.mxu0 %v322
        %662 = vmatpush1.msra.mxu0 %v321
        %663 = vmatprep.mubr.f32.mxu0 %v453
        %664 = vmatmul.mubr.f32.gmra.mrb[0].mxu0 %v193
        %v665 = vpop.f32.mrb[0].mxu0
        %v666 = vadd.f32 0.0, %v665
        %v667 = vpop.f32.mrb[0].mxu0
        %v668 = vadd.f32 0.0, %v667
        %669 = vdwg.mxu0
        %670 = vmatprep.subr.mxu0 %v326
        %671 = vmatpush1.msra.mxu0 %v325
        %672 = vmatprep.subr.mxu0 %v330
        %673 = vmatpush1.msra.mxu0 %v329
        %674 = vmatprep.subr.mxu0 %v334
        %675 = vmatpush1.msra.mxu0 %v333
        %676 = vmatprep.subr.mxu0 %v338
        %677 = vmatpush1.msra.mxu0 %v337
        %678 = vmatprep.subr.mxu0 %v342
        %679 = vmatpush1.msra.mxu0 %v341
        %680 = vmatprep.subr.mxu0 %v346
        %681 = vmatpush1.msra.mxu0 %v345
        %682 = vmatprep.subr.mxu0 %v350
        %683 = vmatpush1.msra.mxu0 %v349
        %684 = vmatprep.subr.mxu0 %v354
        %685 = vmatpush1.msra.mxu0 %v353
        %686 = vmatprep.subr.mxu0 %v358
        %687 = vmatpush1.msra.mxu0 %v357
        %688 = vmatprep.subr.mxu0 %v362
        %689 = vmatpush1.msra.mxu0 %v361
        %690 = vmatprep.subr.mxu0 %v366
        %691 = vmatpush1.msra.mxu0 %v365
        %692 = vmatprep.subr.mxu0 %v370
        %693 = vmatpush1.msra.mxu0 %v369
        %694 = vmatprep.subr.mxu0 %v374
        %695 = vmatpush1.msra.mxu0 %v373
        %696 = vmatprep.subr.mxu0 %v378
        %697 = vmatpush1.msra.mxu0 %v377
        %698 = vmatprep.subr.mxu0 %v382
        %699 = vmatpush1.msra.mxu0 %v381
        %700 = vmatprep.subr.mxu0 %v386
        %701 = vmatpush1.msra.mxu0 %v385
        %702 = vmatprep.subr.mxu0 %v390
        %703 = vmatpush1.msra.mxu0 %v389
        %704 = vmatprep.subr.mxu0 %v394
        %705 = vmatpush1.msra.mxu0 %v393
        %706 = vmatprep.subr.mxu0 %v398
        %707 = vmatpush1.msra.mxu0 %v397
        %708 = vmatprep.subr.mxu0 %v402
        %709 = vmatpush1.msra.mxu0 %v401
        %710 = vmatprep.subr.mxu0 %v406
        %711 = vmatpush1.msra.mxu0 %v405
        %712 = vmatprep.subr.mxu0 %v410
        %713 = vmatpush1.msra.mxu0 %v409
        %714 = vmatprep.subr.mxu0 %v414
        %715 = vmatpush1.msra.mxu0 %v413
        %716 = vmatprep.subr.mxu0 %v418
        %717 = vmatpush1.msra.mxu0 %v417
        %718 = vmatprep.subr.mxu0 %v422
        %719 = vmatpush1.msra.mxu0 %v421
        %720 = vmatprep.subr.mxu0 %v426
        %721 = vmatpush1.msra.mxu0 %v425
        %722 = vmatprep.subr.mxu0 %v430
        %723 = vmatpush1.msra.mxu0 %v429
        %724 = vmatprep.subr.mxu0 %v434
        %725 = vmatpush1.msra.mxu0 %v433
        %726 = vmatprep.subr.mxu0 %v438
        %727 = vmatpush1.msra.mxu0 %v437
        %728 = vmatprep.subr.mxu0 %v442
        %729 = vmatpush1.msra.mxu0 %v441
        %730 = vmatprep.subr.mxu0 %v446
        %731 = vmatpush1.msra.mxu0 %v445
        %732 = vmatprep.subr.mxu0 %v450
        %733 = vmatpush1.msra.mxu0 %v449
        %734 = vmatprep.mubr.f32.mxu0 %v454
        %735 = vmatmul.mubr.f32.gmra.mrb[0].mxu0 %v194
        %v736 = vpop.f32.mrb[0].mxu0
        %v737 = vadd.f32 %v666, %v736
        %v738 = vpop.f32.mrb[0].mxu0
        %v739 = vadd.f32 %v668, %v738
        %740 = vdwg.mxu0
        %741 = vst [vmem:[%s192] sm:$0xf] %v595
        %s742 = scalar_lea.vmem %s192, 4 [#allocation7]
        %743 = vst [vmem:[%s742] sm:$0xf] %v597
        %s744 = scalar_lea.vmem %s192, 8 [#allocation7]
        %745 = vst [vmem:[%s744] sm:$0xf] %v737
        %s746 = scalar_lea.vmem %s192, 12 [#allocation7]
        %747 = vst [vmem:[%s746] sm:$0xf] %v739
        %s748 = sand.u32 %s91, 1
        %s749 = scalar_lea.sflag [#allocation4], %s748
        %s750 = sand.u32 %s91, 1
        %s751 = smul.addr %s750, 16
        %s752 = scalar_lea.vmem [#allocation7], %s751
        // Predicated region
        $region37: #{tpu_custom_call.1} parent=27 // pred_check
          %p753 = pneg %p101
        $region38: #{tpu_custom_call.1} parent=27 // pred_check_branch
          %755 = sbr.rel (%p753) target = $region40
        $region39: #{tpu_custom_call.1} parent=27 // pred_region
          %s757 = ssub.s32 256, 256
          %758 = vsyncadd %s749, %s757
          %s759 = smul.addr %s24, 4
          %s760 = sadd.s32 %s25, %s759
          %s761 = smul.addr %s760, 64
          %s762 = scalar_lea.hbm %s2, %s761
          %s763 = sshll.u32 %s752, 4
          %s764 = int_to_ptr.vmem [resolvable:$true] %s763
          %769 = dma.vmem_to_hbm [thread:$0]  %s764, 256, %s762, %s749, 64, 64, 4
        $region40: #{tpu_custom_call.1} parent=27 // pred_fallthru
          _
      $region28: #{tpu_custom_call.1} parent=5 // pred_fallthru
        _
      %p770 = scmp.le.s32.totalorder 2, %s15
      // Predicated region
      $region41: #{tpu_custom_call.1} parent=5 // pred_check
        %p771 = pneg %p770
      $region42: #{tpu_custom_call.1} parent=5 // pred_check_branch
        %773 = sbr.rel (%p771) target = $region44
      $region43: #{tpu_custom_call.1} parent=5 // pred_region
        %s774 = ssub.s32 %s15, 2
        // Predicated region
        $region45: #{tpu_custom_call.1} parent=43 // pred_check
          %p775 = pneg %p107
        $region46: #{tpu_custom_call.1} parent=43 // pred_check_branch
          %777 = sbr.rel (%p775) target = $region48
        $region47: #{tpu_custom_call.1} parent=43 // pred_region
          %s778 = sand.u32 %s92, 1
          %s779 = scalar_lea.sflag [#allocation4], %s778
          %s780 = sand.u32 %s92, 1
          %s781 = smul.addr %s780, 16
          %s782 = scalar_lea.vmem [#allocation7], %s781
          %783 = dma.done %s779, 256
        $region48: #{tpu_custom_call.1} parent=43 // pred_fallthru
          _
      $region44: #{tpu_custom_call.1} parent=5 // pred_fallthru
        _
    $region6: #{tpu_custom_call.1} parent=1 // loop_footer
      %s19 = sadd.s32 1, %s15
    $region7: #{tpu_custom_call.1} parent=1 // loop_footer_branch
      %14 = sbr.rel target = $region3
    $region8: #{tpu_custom_call.1} parent=1 // loop_exit
      _
    %784 = vsyncpa [#allocation3], 1
    %s785 = scalar_lea.sflag [#allocation3], 1
    %786 = vsyncpa %s785, 1
    %787 = vsyncpa [#allocation6], 1
    %788 = vsyncpa [#allocation4], 1
    %s789 = scalar_lea.sflag [#allocation4], 1
    %790 = vsyncpa %s789, 1

</llo_original>
